<compile_context>
chip_gen: v6e
topology: v6e:2x2x1
jax: 0.10.0
libtpu: 0.0.40
codegen_flags: <defaults>
</compile_context>

<pallas_src>
import functools

import jax
import jax.numpy as jnp
from jax.experimental import pallas as pl
from jax.experimental.pallas import tpu as pltpu


def _layernorm_kernel(x_ref, gamma_ref, beta_ref, o_ref, *, eps: float, inv_d: float):
    # x_ref: (TR, D) tile of rows; gamma_ref / beta_ref: (1, D), VMEM-resident.
    x = x_ref[...].astype(jnp.float32)                       # (TR, D)
    mean = jnp.sum(x, axis=-1, keepdims=True) * inv_d        # (TR, 1)
    xc = x - mean
    var = jnp.sum(xc * xc, axis=-1, keepdims=True) * inv_d   # biased variance
    std = jnp.sqrt(var)
    y = xc / (std + eps)                                     # eps on std (module semantics)
    g = gamma_ref[...].astype(jnp.float32)                   # (1, D) broadcasts over rows
    b = beta_ref[...].astype(jnp.float32)
    o_ref[...] = (g * y + b).astype(o_ref.dtype)


def _pick_row_tile(R: int, dtype, D: int, vmem_budget_bytes: int = 8 << 20) -> int:
    """Largest row tile that divides R, respects sublane granularity, fits VMEM."""
    itemsize = jnp.dtype(dtype).itemsize
    sub = 16 if itemsize == 2 else 8
    # 4x = double-buffered input tile + double-buffered output tile.
    rows_by_vmem = max(sub, vmem_budget_bytes // max(1, 4 * D * itemsize))
    cap = min(2048, rows_by_vmem)
    if R <= cap:
        return R  # full axis extent is always a legal block extent
    ts = (cap // sub) * sub
    while ts >= sub:
        if R % ts == 0:
            return ts
        ts -= sub
    return R


def layer_norm_forward(x: jnp.ndarray,
                       gamma: jnp.ndarray,
                       beta: jnp.ndarray,
                       eps: float = 1e-5) -> jnp.ndarray:
    """LayerNorm over the last axis of x:(B, S, D) with gamma/beta:(1, D)."""
    B, S, D = x.shape
    assert gamma.shape == (1, D) and beta.shape == (1, D)

    R = B * S
    x2 = x.reshape(R, D)                 # free, row-major reshape
    TR = _pick_row_tile(R, x.dtype, D)
    grid = (R // TR,)
    kernel = functools.partial(_layernorm_kernel, eps=eps, inv_d=1.0 / D)

    out2 = pl.pallas_call(
        kernel,
        out_shape=jax.ShapeDtypeStruct((R, D), x.dtype),
        grid_spec=pltpu.PrefetchScalarGridSpec(
            num_scalar_prefetch=0,
            grid=grid,
            in_specs=[
                pl.BlockSpec((TR, D), lambda r: (r, 0)),   # x row tile
                pl.BlockSpec((1, D), lambda r: (0, 0)),    # gamma (resident)
                pl.BlockSpec((1, D), lambda r: (0, 0)),    # beta  (resident)
            ],
            out_specs=pl.BlockSpec((TR, D), lambda r: (r, 0)),
        ),
        compiler_params=pltpu.CompilerParams(
            # Rows are fully independent -> megacore sharding on v7x.
            dimension_semantics=("parallel",),
        ),
    )(x2, gamma, beta)

    return out2.reshape(B, S, D)


if __name__ == "__main__":
    batch, max_seq, d_model = 2, 8, 32
    eps = 1e-5

    key = jax.random.PRNGKey(0)
    kx, kg, kb = jax.random.split(key, 3)
    x = jax.random.normal(kx, (batch, max_seq, d_model), dtype=jnp.float32)
    # Non-trivial affine parameters exercise the gamma/beta path
    # (the module initializes them to ones/zeros, but they are learnable).
    gamma = 1.0 + 0.1 * jax.random.normal(kg, (1, d_model), dtype=jnp.float32)
    beta = 0.1 * jax.random.normal(kb, (1, d_model), dtype=jnp.float32)

    out = layer_norm_forward(x, gamma, beta, eps=eps)
    out = jax.block_until_ready(out)

    # Pure-JAX reference matching the PyTorch forward exactly.
    mean = x.mean(axis=-1, keepdims=True)
    var = ((x - mean) ** 2).mean(axis=-1, keepdims=True)
    std = jnp.sqrt(var)
    ref = gamma * ((x - mean) / (std + eps)) + beta

    assert out.shape == (batch, max_seq, d_model)
    assert jnp.allclose(out, ref, atol=1e-5, rtol=1e-5), "mismatch vs reference"

    print("KERNEL_OK")
</pallas_src>

<mosaic_0001>
module attributes {stable_mosaic.version = 11 : i64} {
  func.func @_layernorm_kernel(%arg0: i32, %arg1: memref<16x32xf32, #tpu.memory_space<vmem>>, %arg2: memref<1x32xf32, #tpu.memory_space<vmem>>, %arg3: memref<1x32xf32, #tpu.memory_space<vmem>>, %arg4: memref<16x32xf32, #tpu.memory_space<vmem>>) attributes {dimension_semantics = [#tpu.dimension_semantics<parallel>], iteration_bounds = array<i64: 1>, scalar_prefetch = 0 : i64, scratch_operands = 0 : i64, tpu.core_type = #tpu.core_type<tc>, window_params = [{transform_indices = @transform_0, window_bounds = array<i64: 16, 32>}, {pipeline_mode = #tpu.pipeline_mode<synchronous>, transform_indices = @transform_1, window_bounds = array<i64: 1, 32>}, {pipeline_mode = #tpu.pipeline_mode<synchronous>, transform_indices = @transform_2, window_bounds = array<i64: 1, 32>}, {transform_indices = @transform_3, window_bounds = array<i64: 16, 32>}]} {
    %c0 = arith.constant 0 : index
    %c0_0 = arith.constant 0 : index
    %0 = vector.load %arg1[%c0, %c0_0] : memref<16x32xf32, #tpu.memory_space<vmem>>, vector<16x32xf32>
    %cst = arith.constant dense<0.000000e+00> : vector<16xf32>
    %1 = vector.multi_reduction <add>, %0, %cst [1] : vector<16x32xf32> to vector<16xf32>
    %2 = vector.shape_cast %1 : vector<16xf32> to vector<16x1xf32>
    %cst_1 = arith.constant 3.125000e-02 : f32
    %3 = vector.broadcast %cst_1 : f32 to vector<16x1xf32>
    %4 = arith.mulf %2, %3 : vector<16x1xf32>
    %5 = vector.broadcast %4 : vector<16x1xf32> to vector<16x32xf32>
    %6 = arith.subf %0, %5 : vector<16x32xf32>
    %7 = arith.mulf %6, %6 : vector<16x32xf32>
    %cst_2 = arith.constant dense<0.000000e+00> : vector<16xf32>
    %8 = vector.multi_reduction <add>, %7, %cst_2 [1] : vector<16x32xf32> to vector<16xf32>
    %9 = vector.shape_cast %8 : vector<16xf32> to vector<16x1xf32>
    %cst_3 = arith.constant 3.125000e-02 : f32
    %10 = vector.broadcast %cst_3 : f32 to vector<16x1xf32>
    %11 = arith.mulf %9, %10 : vector<16x1xf32>
    %12 = math.sqrt %11 : vector<16x1xf32>
    %cst_4 = arith.constant 9.99999974E-6 : f32
    %13 = vector.broadcast %cst_4 : f32 to vector<16x1xf32>
    %14 = arith.addf %12, %13 : vector<16x1xf32>
    %15 = vector.broadcast %14 : vector<16x1xf32> to vector<16x32xf32>
    %16 = arith.divf %6, %15 : vector<16x32xf32>
    %c0_5 = arith.constant 0 : index
    %c0_6 = arith.constant 0 : index
    %17 = vector.load %arg2[%c0_5, %c0_6] : memref<1x32xf32, #tpu.memory_space<vmem>>, vector<1x32xf32>
    %c0_7 = arith.constant 0 : index
    %c0_8 = arith.constant 0 : index
    %18 = vector.load %arg3[%c0_7, %c0_8] : memref<1x32xf32, #tpu.memory_space<vmem>>, vector<1x32xf32>
    %19 = vector.broadcast %17 : vector<1x32xf32> to vector<16x32xf32>
    %20 = arith.mulf %19, %16 : vector<16x32xf32>
    %21 = vector.broadcast %18 : vector<1x32xf32> to vector<16x32xf32>
    %22 = arith.addf %20, %21 : vector<16x32xf32>
    %c0_9 = arith.constant 0 : index
    %c0_10 = arith.constant 0 : index
    %23 = vector.load %arg4[%c0_9, %c0_10] : memref<16x32xf32, #tpu.memory_space<vmem>>, vector<16x32xf32>
    tpu.vector_store %arg4[%c0_9, %c0_10], %22 {strides = array<i32>} : memref<16x32xf32, #tpu.memory_space<vmem>>, vector<16x32xf32>,
    return
  }
  func.func @transform_0(%arg0: i32) -> (i32, i32) {
    %c0_i32 = arith.constant 0 : i32
    %c0_i32_0 = arith.constant 0 : i32
    return %arg0, %c0_i32 : i32, i32
  }
  func.func @transform_1(%arg0: i32) -> (i32, i32) {
    %c0_i32 = arith.constant 0 : i32
    %c0_i32_0 = arith.constant 0 : i32
    %c0_i32_1 = arith.constant 0 : i32
    return %c0_i32, %c0_i32_0 : i32, i32
  }
  func.func @transform_2(%arg0: i32) -> (i32, i32) {
    %c0_i32 = arith.constant 0 : i32
    %c0_i32_0 = arith.constant 0 : i32
    %c0_i32_1 = arith.constant 0 : i32
    return %c0_i32, %c0_i32_0 : i32, i32
  }
  func.func @transform_3(%arg0: i32) -> (i32, i32) {
    %c0_i32 = arith.constant 0 : i32
    %c0_i32_0 = arith.constant 0 : i32
    return %arg0, %c0_i32 : i32, i32
  }
}

</mosaic_0001>

<llo_original>
// kernel: tpu_custom_call.1
$region0: #{tpu_custom_call.1}
  #allocation0 [shape = 'u32[]', space=smem, size = 0x4, offset = 0x4, fixed_abs, tag = 'smem constant byte address 0x4 - core index']
  #allocation1 [shape = 'u32[144,128]{1,0:T(1,128)}', space=vmem, size = 0x12000, scoped, tag = 'internal scratch']
  %s0 = inlined_call_operand.hbm [shape: f32[16,32], index: 0, kind: input, shape index: {}]
  %s1 = inlined_call_operand.vmem [shape: f32[1,32], index: 1, kind: input, shape index: {}]
  %s2 = inlined_call_operand.vmem [shape: f32[1,32], index: 2, kind: input, shape index: {}]
  %s3 = inlined_call_operand.hbm [shape: f32[16,32], index: 3, kind: output, shape index: {}]
  %s4 = sld [smem:[#allocation0]]
  $region26: #{tpu_custom_call.1} parent=0
    _
  %s6 = ssub.s32 1, %s4
  %s7 = scalar_select 0, %s6, %s4
  $region1: #{tpu_custom_call.1} parent=0
    #allocation2 [shape = 'u8[8192]{0}', space=vmem, size = 0x2000, scoped, tag = 'input window, operand 0, single buffered']
    #allocation3 [shape = 's32[1]{0}', space=sflag, size = 0x4, scoped, tag = 'scoped memory for tpu_custom_call.1']
    #allocation4 [shape = 's32[1]{0}', space=sflag, size = 0x4, scoped, tag = 'scoped memory for tpu_custom_call.1']
    #allocation5 [shape = 'u8[8192]{0}', space=vmem, size = 0x2000, scoped, tag = 'output window, operand 0, single buffered']
    %8 = vsyncpa [#allocation3], 0
    %9 = vsyncpa [#allocation4], 0
    // Predicated region
    $region2: #{tpu_custom_call.1} parent=1 // pred_check
      _
    $region3: #{tpu_custom_call.1} parent=1 // pred_check_branch
      %11 = sbr.rel (0) target = $region5
    $region4: #{tpu_custom_call.1} parent=1 // pred_region
      %s13 = ssub.s32 256, 256
      %14 = vsyncadd [#allocation3], %s13
      %s15 = sshll.u32 [#allocation2], 4
      %s16 = int_to_ptr.vmem [resolvable:$true] %s15
      %21 = dma.hbm_to_vmem [thread:$0]  %s0, 256, %s16, [#allocation3], 128, 128, 8
    $region5: #{tpu_custom_call.1} parent=1 // pred_fallthru
      _
    // Predicated region
    $region6: #{tpu_custom_call.1} parent=1 // pred_check
      _
    $region7: #{tpu_custom_call.1} parent=1 // pred_check_branch
      %23 = sbr.rel (0) target = $region9
    $region8: #{tpu_custom_call.1} parent=1 // pred_region
      _
    $region9: #{tpu_custom_call.1} parent=1 // pred_fallthru
      _
    // Predicated region
    $region10: #{tpu_custom_call.1} parent=1 // pred_check
      _
    $region11: #{tpu_custom_call.1} parent=1 // pred_check_branch
      %25 = sbr.rel (0) target = $region13
    $region12: #{tpu_custom_call.1} parent=1 // pred_region
      _
    $region13: #{tpu_custom_call.1} parent=1 // pred_fallthru
      _
    // Predicated region
    $region14: #{tpu_custom_call.1} parent=1 // pred_check
      _
    $region15: #{tpu_custom_call.1} parent=1 // pred_check_branch
      %27 = sbr.rel (0) target = $region17
    $region16: #{tpu_custom_call.1} parent=1 // pred_region
      %28 = dma.done [#allocation3], 256
    $region17: #{tpu_custom_call.1} parent=1 // pred_fallthru
      _
    %v29 = vld [vmem:[#allocation2] sm:$0xff]
    %v30 = vld [vmem:[#allocation2 + $0x8] sm:$0xff]
    %vm31 = vcmask 261120
    %v32 = vsel %vm31, %v29, 0.0
    %33 = vadd.xlane.f32.xlu0 %v32
    %v34 = vpop.xlane.xlu0 %33
    %v35 = vsel %vm31, %v30, 0.0
    %36 = vadd.xlane.f32.xlu0 %v35
    %v37 = vpop.xlane.xlu0 %36
    %v38 = vmul.f32 %v34, 0.03125
    %v39 = vmul.f32 %v37, 0.03125
    %v40 = vsub.f32 %v29, %v38
    %v41 = vsub.f32 %v30, %v39
    %v42 = vmul.f32 %v40, %v40
    %v43 = vmul.f32 %v41, %v41
    %v44 = vsel %vm31, %v42, 0.0
    %45 = vadd.xlane.f32.xlu0 %v44
    %v46 = vpop.xlane.xlu0 %45
    %v47 = vsel %vm31, %v43, 0.0
    %48 = vadd.xlane.f32.xlu0 %v47
    %v49 = vpop.xlane.xlu0 %48
    %v50 = vmul.f32 %v46, 0.03125
    %v51 = vmul.f32 %v49, 0.03125
    %v52 = vrsqrt.pop %v50
    %v53 = vmul.f32 %v50, %v52
    %vm54 = vcmp.eq.f32.partialorder %v50, inf
    %v55 = vsel %vm54, %v50, %v53
    %vm56 = vcmp.eq.f32.partialorder %v50, 0.0
    %v57 = vand.u32 %v50, 2147483648
    %v58 = vsel %vm56, %v57, %v55
    %v59 = vrsqrt.pop %v51
    %v60 = vmul.f32 %v51, %v59
    %vm61 = vcmp.eq.f32.partialorder %v51, inf
    %v62 = vsel %vm61, %v51, %v60
    %vm63 = vcmp.eq.f32.partialorder %v51, 0.0
    %v64 = vand.u32 %v51, 2147483648
    %v65 = vsel %vm63, %v64, %v62
    %v66 = vadd.f32 %v58, 1e-05
    %v67 = vadd.f32 %v65, 1e-05
    %v68 = vrcp.pop %v66
    %v69 = vmul.f32 %v40, %v68
    %v70 = vrcp.pop %v67
    %v71 = vmul.f32 %v41, %v70
    %v72 = vld [vmem:[%s1] sm:$0x1]
    %v73 = vld [vmem:[%s2] sm:$0x1]
    %v75 = vlaneseq
    %v76 = vshrl.u32 %v75, 7
    %v77 = vsub.s32 0, %v76
    %v78 = vrot.slane %v72, %v77
    %v80 = vmul.f32 %v78, %v69
    %v81 = vmul.f32 %v78, %v71
    %v83 = vlaneseq
    %v84 = vshrl.u32 %v83, 7
    %v85 = vsub.s32 0, %v84
    %v86 = vrot.slane %v73, %v85
    %v88 = vadd.f32 %v80, %v86
    %v89 = vadd.f32 %v81, %v86
    %90 = vst.msk [vmem:[#allocation5] sm:$0xff] %vm31, %v88
    %91 = vst.msk [vmem:[#allocation5 + $0x8] sm:$0xff] %vm31, %v89
    // Predicated region
    $region18: #{tpu_custom_call.1} parent=1 // pred_check
      _
    $region19: #{tpu_custom_call.1} parent=1 // pred_check_branch
      %93 = sbr.rel (0) target = $region21
    $region20: #{tpu_custom_call.1} parent=1 // pred_region
      %s95 = ssub.s32 256, 256
      %96 = vsyncadd [#allocation4], %s95
      %s97 = sshll.u32 [#allocation5], 4
      %s98 = int_to_ptr.vmem [resolvable:$true] %s97
      %103 = dma.vmem_to_hbm [thread:$0]  %s98, 256, %s3, [#allocation4], 128, 128, 8
    $region21: #{tpu_custom_call.1} parent=1 // pred_fallthru
      _
    // Predicated region
    $region22: #{tpu_custom_call.1} parent=1 // pred_check
      _
    $region23: #{tpu_custom_call.1} parent=1 // pred_check_branch
      %105 = sbr.rel (0) target = $region25
    $region24: #{tpu_custom_call.1} parent=1 // pred_region
      %106 = dma.done [#allocation4], 256
    $region25: #{tpu_custom_call.1} parent=1 // pred_fallthru
      _
    %107 = vsyncpa [#allocation3], 1
    %108 = vsyncpa [#allocation4], 1

</llo_original>
